<compile_context>
chip_gen: v7x
topology: tpu7x:2x2x1
jax: 0.10.0
libtpu: 0.0.40
codegen_flags: <defaults>
</compile_context>

<pallas_src>
import functools

import jax
import jax.numpy as jnp
from jax.experimental import pallas as pl
from jax.experimental.pallas import tpu as pltpu


def _conv2d_gemm_kernel(x_ref, w_ref, b_ref, o_ref, lhs_ref, *,
                        NB, H, W, Cin, Ho, Wo, Cout, KH, KW, P):
    """Conv2d(stride=1, pad=P) of NB images as one lane-dense GEMM.

    x_ref  : (NB*H,  W*Cin)         unpadded activations, channels-last rows
    w_ref  : (KH*Wp*Cin, Wo*Cout)   width-lowered weight (built in wrapper)
    b_ref  : (1, Wo*Cout)           bias tiled across output columns
    o_ref  : (NB*Ho, Wo*Cout)       lane-dense output rows
    lhs_ref: (NB*Ho, KH*Wp*Cin)     VMEM scratch: zero-padded row-halo LHS
    """
    WpC = (W + 2 * P) * Cin

    # Zero once -> this IS the spatial zero padding (left/right columns and
    # top/bottom halo rows); no wrapper-side jnp.pad / extra HBM traffic.
    lhs_ref[...] = jnp.zeros_like(lhs_ref)

    # Scatter the kh-shifted row slabs of every image into the LHS scratch.
    # All slice bounds are static Python ints -> plain VMEM vector copies.
    for n in range(NB):
        for kh in range(KH):
            ho_lo = max(0, P - kh)              # first output row hit by tap
            ho_hi = min(Ho, H + P - kh)         # one past the last
            if ho_lo >= ho_hi:
                continue
            src_lo = n * H + (ho_lo + kh - P)
            src_hi = src_lo + (ho_hi - ho_lo)
            dst_c = kh * WpC + P * Cin
            lhs_ref[n * Ho + ho_lo:n * Ho + ho_hi,
                    dst_c:dst_c + W * Cin] = x_ref[src_lo:src_hi, :]

    # Single fused MXU contraction (K = KH*Wp*Cin), f32 accumulation, with a
    # lane-dense (Wo*Cout-wide) free dimension.
    acc = jnp.dot(lhs_ref[...], w_ref[...], preferred_element_type=jnp.float32)

    # Full-width VPU epilogue: bias add + cast.  dropout(p=0) / batchnorm=None
    # / activation=None are Identity at the module defaults.
    acc = acc + b_ref[...].astype(jnp.float32)
    o_ref[...] = acc.astype(o_ref.dtype)


def _lower_weight(weight_oihw, Wp, Wo):
    """OIHW conv weight -> (KH*Wp*Cin, Wo*Cout) GEMM right-hand side.

    rhs[(kh, w', ci), (wo, co)] = weight[co, ci, kh, w'-wo]  if 0 <= w'-wo < KW
                                  else 0
    so that  lhs @ rhs  reproduces the stride-1 convolution with the output
    width folded into the lane-dense free dimension.
    """
    Cout, Cin, KH, KW = weight_oihw.shape
    w_hwio = jnp.transpose(weight_oihw, (2, 3, 1, 0))           # (KH,KW,Cin,Cout)
    kw_idx = jnp.arange(Wp)[:, None] - jnp.arange(Wo)[None, :]  # (Wp, Wo)
    valid = (kw_idx >= 0) & (kw_idx < KW)
    gathered = w_hwio[:, jnp.clip(kw_idx, 0, KW - 1), :, :]     # (KH,Wp,Wo,Cin,Cout)
    gathered = jnp.where(valid[None, :, :, None, None], gathered, 0.0)
    rhs = jnp.transpose(gathered, (0, 1, 3, 2, 4))              # (KH,Wp,Cin,Wo,Cout)
    return rhs.reshape(KH * Wp * Cin, Wo * Cout)


def conv2d_op_forward(x_nchw, weight_oihw, bias, *, stride=1, padding=1,
                      dilation=1, groups=1, batch_tile=None):
    """Pallas implementation of Conv2dOp.forward (stride=1, dilation=1)."""
    # Fail loudly on configs the kernel does not implement.
    assert stride == 1 and dilation == 1 and groups == 1, (
        "Pallas Conv2dOp kernel implements stride=1 / dilation=1 / groups=1 "
        "(the reciprocal_gated_cell defaults).")

    N, Cin, H, W = x_nchw.shape
    Cout, Cin_w, KH, KW = weight_oihw.shape
    assert Cin == Cin_w
    P = padding
    Wp = W + 2 * P
    Ho = H + 2 * P - KH + 1
    Wo = Wp - KW + 1

    NB = N if batch_tile is None else batch_tile     # images per grid step
    assert N % NB == 0

    # Layout glue (plain JAX around the pallas_call):
    #  - activations: NCHW -> NHWC -> 2D (N*H, W*Cin) channel-last rows
    #  - weight: width-lowered GEMM RHS (reusable across timesteps)
    #  - bias: tiled to one lane-dense row
    x2d = jnp.transpose(x_nchw, (0, 2, 3, 1)).reshape(N * H, W * Cin)
    rhs = _lower_weight(weight_oihw, Wp, Wo)          # (KH*Wp*Cin, Wo*Cout)
    b2d = jnp.tile(bias, Wo).reshape(1, Wo * Cout)

    kernel = functools.partial(
        _conv2d_gemm_kernel, NB=NB, H=H, W=W, Cin=Cin, Ho=Ho, Wo=Wo,
        Cout=Cout, KH=KH, KW=KW, P=P)

    itemsize = jnp.dtype(x2d.dtype).itemsize
    flops = 2 * N * Ho * Wo * Cout * KH * KW * Cin
    bytes_accessed = (x2d.size * itemsize + rhs.size * jnp.dtype(rhs.dtype).itemsize
                      + b2d.size * jnp.dtype(b2d.dtype).itemsize
                      + N * Ho * Wo * Cout * itemsize)

    out2d = pl.pallas_call(
        kernel,
        out_shape=jax.ShapeDtypeStruct((N * Ho, Wo * Cout), x2d.dtype),
        grid_spec=pltpu.PrefetchScalarGridSpec(
            num_scalar_prefetch=0,
            grid=(N // NB,),
            in_specs=[
                pl.BlockSpec((NB * H, W * Cin), lambda g: (g, 0)),
                pl.BlockSpec((KH * Wp * Cin, Wo * Cout), lambda g: (0, 0)),
                pl.BlockSpec((1, Wo * Cout), lambda g: (0, 0)),
            ],
            out_specs=pl.BlockSpec((NB * Ho, Wo * Cout), lambda g: (g, 0)),
            scratch_shapes=[pltpu.VMEM((NB * Ho, KH * Wp * Cin), x2d.dtype)],
        ),
        compiler_params=pltpu.CompilerParams(
            dimension_semantics=("parallel",)),     # batch chunks split on v7x
        cost_estimate=pl.CostEstimate(
            flops=flops, transcendentals=0, bytes_accessed=bytes_accessed),
    )(x2d, rhs, b2d)

    # (N*Ho, Wo*Cout) -> NCHW, matching torch Conv2d output exactly.
    return jnp.transpose(out2d.reshape(N, Ho, Wo, Cout), (0, 3, 1, 2))


if __name__ == "__main__":
    key = jax.random.PRNGKey(0)
    kx, kw, kb = jax.random.split(key, 3)

    # Small shapes: batch=2, in_channels=4, out_channels=8, spatial=16,
    # ksize=(3,3), stride=1, padding=1 (same-size output).  Wo*Cout = 128.
    N, Cin, H, W = 2, 4, 16, 16
    Cout, KH, KW = 8, 3, 3

    x = jax.random.normal(kx, (N, Cin, H, W), dtype=jnp.float32)
    weight = jax.random.normal(kw, (Cout, Cin, KH, KW), dtype=jnp.float32) * 0.1
    bias = jax.random.normal(kb, (Cout,), dtype=jnp.float32) * 0.1

    out = jax.jit(conv2d_op_forward)(x, weight, bias)
    out = jax.block_until_ready(out)

    # Sanity check against XLA's conv (same NCHW/OIHW semantics as PyTorch).
    ref = jax.lax.conv_general_dilated(
        x, weight, window_strides=(1, 1), padding=((1, 1), (1, 1)),
        dimension_numbers=("NCHW", "OIHW", "NCHW")) + bias[None, :, None, None]
    assert out.shape == (N, Cout, H, W)
    assert jnp.allclose(out, ref, atol=2e-4, rtol=2e-4)

    print("KERNEL_OK")
</pallas_src>

<mosaic_0001>
module attributes {stable_mosaic.version = 11 : i64} {
  func.func @_conv2d_gemm_kernel(%arg0: i32, %arg1: memref<32x64xf32, #tpu.memory_space<vmem>>, %arg2: memref<216x128xf32, #tpu.memory_space<vmem>>, %arg3: memref<1x128xf32, #tpu.memory_space<vmem>>, %arg4: memref<32x128xf32, #tpu.memory_space<vmem>>, %arg5: memref<32x216xf32, #tpu.memory_space<vmem>>) attributes {dimension_semantics = [#tpu.dimension_semantics<parallel>], iteration_bounds = array<i64: 1>, scalar_prefetch = 0 : i64, scratch_operands = 1 : i64, tpu.core_type = #tpu.core_type<tc>, window_params = [{transform_indices = @transform_0, window_bounds = array<i64: 32, 64>}, {pipeline_mode = #tpu.pipeline_mode<synchronous>, transform_indices = @transform_1, window_bounds = array<i64: 216, 128>}, {pipeline_mode = #tpu.pipeline_mode<synchronous>, transform_indices = @transform_2, window_bounds = array<i64: 1, 128>}, {transform_indices = @transform_3, window_bounds = array<i64: 32, 128>}]} {
    %cst = arith.constant 0.000000e+00 : f32
    %0 = vector.broadcast %cst : f32 to vector<32x216xf32>
    %c0 = arith.constant 0 : index
    %c0_0 = arith.constant 0 : index
    %1 = vector.load %arg5[%c0, %c0_0] : memref<32x216xf32, #tpu.memory_space<vmem>>, vector<32x216xf32>
    tpu.vector_store %arg5[%c0, %c0_0], %0 {strides = array<i32>} : memref<32x216xf32, #tpu.memory_space<vmem>>, vector<32x216xf32>,
    %c0_1 = arith.constant 0 : index
    %c0_2 = arith.constant 0 : index
    %2 = vector.load %arg1[%c0_1, %c0_2] : memref<32x64xf32, #tpu.memory_space<vmem>>, vector<15x64xf32>
    %c1 = arith.constant 1 : index
    %c4 = arith.constant 4 : index
    %3 = vector.load %arg5[%c1, %c4] : memref<32x216xf32, #tpu.memory_space<vmem>>, vector<15x64xf32>
    tpu.vector_store %arg5[%c1, %c4], %2 {strides = array<i32>} : memref<32x216xf32, #tpu.memory_space<vmem>>, vector<15x64xf32>,
    %c0_3 = arith.constant 0 : index
    %c0_4 = arith.constant 0 : index
    %4 = vector.load %arg1[%c0_3, %c0_4] : memref<32x64xf32, #tpu.memory_space<vmem>>, vector<16x64xf32>
    %c0_5 = arith.constant 0 : index
    %c76 = arith.constant 76 : index
    %5 = vector.load %arg5[%c0_5, %c76] : memref<32x216xf32, #tpu.memory_space<vmem>>, vector<16x64xf32>
    tpu.vector_store %arg5[%c0_5, %c76], %4 {strides = array<i32>} : memref<32x216xf32, #tpu.memory_space<vmem>>, vector<16x64xf32>,
    %c1_6 = arith.constant 1 : index
    %c0_7 = arith.constant 0 : index
    %6 = vector.load %arg1[%c1_6, %c0_7] : memref<32x64xf32, #tpu.memory_space<vmem>>, vector<15x64xf32>
    %c0_8 = arith.constant 0 : index
    %c148 = arith.constant 148 : index
    %7 = vector.load %arg5[%c0_8, %c148] : memref<32x216xf32, #tpu.memory_space<vmem>>, vector<15x64xf32>
    tpu.vector_store %arg5[%c0_8, %c148], %6 {strides = array<i32>} : memref<32x216xf32, #tpu.memory_space<vmem>>, vector<15x64xf32>,
    %c16 = arith.constant 16 : index
    %c0_9 = arith.constant 0 : index
    %8 = vector.load %arg1[%c16, %c0_9] : memref<32x64xf32, #tpu.memory_space<vmem>>, vector<15x64xf32>
    %c17 = arith.constant 17 : index
    %c4_10 = arith.constant 4 : index
    %9 = vector.load %arg5[%c17, %c4_10] : memref<32x216xf32, #tpu.memory_space<vmem>>, vector<15x64xf32>
    tpu.vector_store %arg5[%c17, %c4_10], %8 {strides = array<i32>} : memref<32x216xf32, #tpu.memory_space<vmem>>, vector<15x64xf32>,
    %c16_11 = arith.constant 16 : index
    %c0_12 = arith.constant 0 : index
    %10 = vector.load %arg1[%c16_11, %c0_12] : memref<32x64xf32, #tpu.memory_space<vmem>>, vector<16x64xf32>
    %c16_13 = arith.constant 16 : index
    %c76_14 = arith.constant 76 : index
    %11 = vector.load %arg5[%c16_13, %c76_14] : memref<32x216xf32, #tpu.memory_space<vmem>>, vector<16x64xf32>
    tpu.vector_store %arg5[%c16_13, %c76_14], %10 {strides = array<i32>} : memref<32x216xf32, #tpu.memory_space<vmem>>, vector<16x64xf32>,
    %c17_15 = arith.constant 17 : index
    %c0_16 = arith.constant 0 : index
    %12 = vector.load %arg1[%c17_15, %c0_16] : memref<32x64xf32, #tpu.memory_space<vmem>>, vector<15x64xf32>
    %c16_17 = arith.constant 16 : index
    %c148_18 = arith.constant 148 : index
    %13 = vector.load %arg5[%c16_17, %c148_18] : memref<32x216xf32, #tpu.memory_space<vmem>>, vector<15x64xf32>
    tpu.vector_store %arg5[%c16_17, %c148_18], %12 {strides = array<i32>} : memref<32x216xf32, #tpu.memory_space<vmem>>, vector<15x64xf32>,
    %c0_19 = arith.constant 0 : index
    %c0_20 = arith.constant 0 : index
    %14 = vector.load %arg5[%c0_19, %c0_20] : memref<32x216xf32, #tpu.memory_space<vmem>>, vector<32x216xf32>
    %c0_21 = arith.constant 0 : index
    %c0_22 = arith.constant 0 : index
    %15 = vector.load %arg2[%c0_21, %c0_22] : memref<216x128xf32, #tpu.memory_space<vmem>>, vector<216x128xf32>
    %cst_23 = arith.constant dense<0.000000e+00> : vector<32x128xf32>
    %16 = tpu.matmul %14, %15, %cst_23 {dimension_numbers = #tpu.dot_dimension_numbers<[1], [0], [0], [1], [0, 0, 1, 1], [], []>} : vector<32x216xf32>, vector<216x128xf32>, vector<32x128xf32> -> vector<32x128xf32>
    %c0_24 = arith.constant 0 : index
    %c0_25 = arith.constant 0 : index
    %17 = vector.load %arg3[%c0_24, %c0_25] : memref<1x128xf32, #tpu.memory_space<vmem>>, vector<1x128xf32>
    %18 = vector.broadcast %17 : vector<1x128xf32> to vector<32x128xf32>
    %19 = arith.addf %16, %18 : vector<32x128xf32>
    %c0_26 = arith.constant 0 : index
    %c0_27 = arith.constant 0 : index
    %20 = vector.load %arg4[%c0_26, %c0_27] : memref<32x128xf32, #tpu.memory_space<vmem>>, vector<32x128xf32>
    tpu.vector_store %arg4[%c0_26, %c0_27], %19 {strides = array<i32>} : memref<32x128xf32, #tpu.memory_space<vmem>>, vector<32x128xf32>,
    return
  }
  func.func @transform_0(%arg0: i32) -> (i32, i32) {
    %c0_i32 = arith.constant 0 : i32
    %c0_i32_0 = arith.constant 0 : i32
    return %arg0, %c0_i32 : i32, i32
  }
  func.func @transform_1(%arg0: i32) -> (i32, i32) {
    %c0_i32 = arith.constant 0 : i32
    %c0_i32_0 = arith.constant 0 : i32
    %c0_i32_1 = arith.constant 0 : i32
    return %c0_i32, %c0_i32_0 : i32, i32
  }
  func.func @transform_2(%arg0: i32) -> (i32, i32) {
    %c0_i32 = arith.constant 0 : i32
    %c0_i32_0 = arith.constant 0 : i32
    %c0_i32_1 = arith.constant 0 : i32
    return %c0_i32, %c0_i32_0 : i32, i32
  }
  func.func @transform_3(%arg0: i32) -> (i32, i32) {
    %c0_i32 = arith.constant 0 : i32
    %c0_i32_0 = arith.constant 0 : i32
    return %arg0, %c0_i32 : i32, i32
  }
}

</mosaic_0001>

<llo_original>
// kernel: tile.8
$region0: #{tile.8}
  #allocation0 [shape = 's32[1]{0}', space=sflag, size = 0x4, scoped, tag = 'scoped memory for tile.8']
  %s0 = inlined_call_operand.vmem [shape: f32[8], index: 0, kind: input, shape index: {}]
  %s1 = inlined_call_operand.vmem [shape: f32[16,8], index: 1, kind: output, shape index: {}]
  // Predicated region
  $region2: #{tile.8} parent=0 // pred_check
    _
  $region3: #{tile.8} parent=0 // pred_check_branch
    %3 = sbr.rel (0) target = $region5
  $region4: #{tile.8} parent=0 // pred_region
    _
  $region5: #{tile.8} parent=0 // pred_fallthru
    _
  %v4 = vld [vmem:[%s0] ss:$0 sm:$0xff]
  %5 = vst [vmem:[%s1] sm:$0xff] %v4
  %s6 = scalar_lea.vmem %s1, 8
  %7 = vst [vmem:[%s6] sm:$0xff] %v4

// kernel: tile.9
$region0: #{tile.9}
  %s0 = inlined_call_operand.vmem [shape: f32[16,8], index: 0, kind: input, shape index: {}]
  %s1 = inlined_call_operand.vmem [shape: f32[1,128], index: 1, kind: output, shape index: {}]
  $region1: #{tile.9} parent=0
    #allocation0 [shape = 'u8[4096]{0}', space=vmem, size = 0x1000, scoped, tag = 'scoped mem for output reshape']
    %v2 = vld [vmem:[%s0] sm:$0x1]
    %vm3 = vcmask 64512
    %4 = vst.msk [vmem:[#allocation0] sm:$0x1] %vm3, %v2
    %s5 = scalar_lea.vmem %s0, 15
    %v6 = vld [vmem:[%s5] sm:$0x1]
    %7 = vrot.lane.b32.xlu0 %v6, 120
    %v8 = vpop.permute.xlu0 %7
    %vm9 = vcmask 1048512
    %10 = vst.msk [vmem:[#allocation0] sm:$0x1] %vm9, %v8
    %s11 = scalar_lea.vmem %s0, 14
    %v12 = vld [vmem:[%s11] sm:$0x1]
    %13 = vrot.lane.b32.xlu0 %v12, 112
    %v14 = vpop.permute.xlu0 %13
    %vm15 = vcmask 982912
    %16 = vst.msk [vmem:[#allocation0] sm:$0x1] %vm15, %v14
    %s17 = scalar_lea.vmem %s0, 13
    %v18 = vld [vmem:[%s17] sm:$0x1]
    %19 = vrot.lane.b32.xlu0 %v18, 104
    %v20 = vpop.permute.xlu0 %19
    %vm21 = vcmask 917312
    %22 = vst.msk [vmem:[#allocation0] sm:$0x1] %vm21, %v20
    %s23 = scalar_lea.vmem %s0, 12
    %v24 = vld [vmem:[%s23] sm:$0x1]
    %25 = vrot.lane.b32.xlu0 %v24, 96
    %v26 = vpop.permute.xlu0 %25
    %vm27 = vcmask 851712
    %28 = vst.msk [vmem:[#allocation0] sm:$0x1] %vm27, %v26
    %s29 = scalar_lea.vmem %s0, 11
    %v30 = vld [vmem:[%s29] sm:$0x1]
    %31 = vrot.lane.b32.xlu0 %v30, 88
    %v32 = vpop.permute.xlu0 %31
    %vm33 = vcmask 786112
    %34 = vst.msk [vmem:[#allocation0] sm:$0x1] %vm33, %v32
    %s35 = scalar_lea.vmem %s0, 10
    %v36 = vld [vmem:[%s35] sm:$0x1]
    %37 = vrot.lane.b32.xlu0 %v36, 80
    %v38 = vpop.permute.xlu0 %37
    %vm39 = vcmask 720512
    %40 = vst.msk [vmem:[#allocation0] sm:$0x1] %vm39, %v38
    %s41 = scalar_lea.vmem %s0, 9
    %v42 = vld [vmem:[%s41] sm:$0x1]
    %43 = vrot.lane.b32.xlu0 %v42, 72
    %v44 = vpop.permute.xlu0 %43
    %vm45 = vcmask 654912
    %46 = vst.msk [vmem:[#allocation0] sm:$0x1] %vm45, %v44
    %s47 = scalar_lea.vmem %s0, 8
    %v48 = vld [vmem:[%s47] sm:$0x1]
    %49 = vrot.lane.b32.xlu0 %v48, 64
    %v50 = vpop.permute.xlu0 %49
    %vm51 = vcmask 589312
    %52 = vst.msk [vmem:[#allocation0] sm:$0x1] %vm51, %v50
    %s53 = scalar_lea.vmem %s0, 7
    %v54 = vld [vmem:[%s53] sm:$0x1]
    %55 = vrot.lane.b32.xlu0 %v54, 56
    %v56 = vpop.permute.xlu0 %55
    %vm57 = vcmask 523712
    %58 = vst.msk [vmem:[#allocation0] sm:$0x1] %vm57, %v56
    %s59 = scalar_lea.vmem %s0, 6
    %v60 = vld [vmem:[%s59] sm:$0x1]
    %61 = vrot.lane.b32.xlu0 %v60, 48
    %v62 = vpop.permute.xlu0 %61
    %vm63 = vcmask 458112
    %64 = vst.msk [vmem:[#allocation0] sm:$0x1] %vm63, %v62
    %s65 = scalar_lea.vmem %s0, 5
    %v66 = vld [vmem:[%s65] sm:$0x1]
    %67 = vrot.lane.b32.xlu0 %v66, 40
    %v68 = vpop.permute.xlu0 %67
    %vm69 = vcmask 392512
    %70 = vst.msk [vmem:[#allocation0] sm:$0x1] %vm69, %v68
    %s71 = scalar_lea.vmem %s0, 4
    %v72 = vld [vmem:[%s71] sm:$0x1]
    %73 = vrot.lane.b32.xlu0 %v72, 32
    %v74 = vpop.permute.xlu0 %73
    %vm75 = vcmask 326912
    %76 = vst.msk [vmem:[#allocation0] sm:$0x1] %vm75, %v74
    %s77 = scalar_lea.vmem %s0, 3
    %v78 = vld [vmem:[%s77] sm:$0x1]
    %79 = vrot.lane.b32.xlu0 %v78, 24
    %v80 = vpop.permute.xlu0 %79
    %vm81 = vcmask 261312
    %82 = vst.msk [vmem:[#allocation0] sm:$0x1] %vm81, %v80
    %s83 = scalar_lea.vmem %s0, 2
    %v84 = vld [vmem:[%s83] sm:$0x1]
    %85 = vrot.lane.b32.xlu0 %v84, 16
    %v86 = vpop.permute.xlu0 %85
    %vm87 = vcmask 195712
    %88 = vst.msk [vmem:[#allocation0] sm:$0x1] %vm87, %v86
    %s89 = scalar_lea.vmem %s0, 1
    %v90 = vld [vmem:[%s89] sm:$0x1]
    %91 = vrot.lane.b32.xlu0 %v90, 8
    %v92 = vpop.permute.xlu0 %91
    %vm93 = vcmask 130112
    %94 = vst.msk [vmem:[#allocation0] sm:$0x1] %vm93, %v92
    %s96 = sshllo.u32 0, 1
    %v98 = vld [vmem:[#allocation0] sm:%s96]
    %s99 = sshllo.u32 0, 1
    %100 = vst [vmem:[%s1] sm:%s99] %v98

// kernel: conv2d_op_forward.1
$region0: #{conv2d_op_forward.1}
  #allocation0 [shape = 'u32[]', space=smem, size = 0x4, offset = 0x4, fixed_abs, tag = 'smem constant byte address 0x4 - core index']
  #allocation1 [shape = 'u32[144,128]{1,0:T(1,128)}', space=vmem, size = 0x12000, scoped, tag = 'internal scratch']
  #allocation2 [shape = 'f32[32,216]{1,0:T(8,128)}', space=vmem, size = 0x8000, scoped, tag = 'scratch operand']
  %s0 = inlined_call_operand.vmem [shape: f32[32,64], index: 0, kind: input, shape index: {}]
  %s1 = inlined_call_operand.vmem [shape: f32[216,128], index: 1, kind: input, shape index: {}]
  %s2 = inlined_call_operand.vmem [shape: f32[1,128], index: 2, kind: input, shape index: {}]
  %s3 = inlined_call_operand.vmem [shape: f32[32,128], index: 3, kind: output, shape index: {}]
  %s4 = sld [smem:[#allocation0]]
  $region22: #{conv2d_op_forward.1} parent=0
    _
  %s6 = ssub.s32 1, %s4
  %s7 = scalar_select 0, %s6, %s4
  // Predicated region
  $region2: #{conv2d_op_forward.1} parent=0 // pred_check
    _
  $region3: #{conv2d_op_forward.1} parent=0 // pred_check_branch
    %9 = sbr.rel (0) target = $region5
  $region4: #{conv2d_op_forward.1} parent=0 // pred_region
    _
  $region5: #{conv2d_op_forward.1} parent=0 // pred_fallthru
    _
  // Predicated region
  $region6: #{conv2d_op_forward.1} parent=0 // pred_check
    _
  $region7: #{conv2d_op_forward.1} parent=0 // pred_check_branch
    %11 = sbr.rel (0) target = $region9
  $region8: #{conv2d_op_forward.1} parent=0 // pred_region
    _
  $region9: #{conv2d_op_forward.1} parent=0 // pred_fallthru
    _
  // Predicated region
  $region10: #{conv2d_op_forward.1} parent=0 // pred_check
    _
  $region11: #{conv2d_op_forward.1} parent=0 // pred_check_branch
    %13 = sbr.rel (0) target = $region13
  $region12: #{conv2d_op_forward.1} parent=0 // pred_region
    _
  $region13: #{conv2d_op_forward.1} parent=0 // pred_fallthru
    _
  %14 = vst [vmem:[#allocation2] sm:$0xff] 0.0
  %vm15 = vcmask 719872
  %16 = vst.msk [vmem:[#allocation2 + $0x8] sm:$0xff] %vm15, 0.0
  %17 = vst [vmem:[#allocation2 + $0x10] sm:$0xff] 0.0
  %18 = vst.msk [vmem:[#allocation2 + $0x18] sm:$0xff] %vm15, 0.0
  %19 = vst [vmem:[#allocation2 + $0x20] sm:$0xff] 0.0
  %20 = vst.msk [vmem:[#allocation2 + $0x28] sm:$0xff] %vm15, 0.0
  %21 = vst [vmem:[#allocation2 + $0x30] sm:$0xff] 0.0
  %22 = vst.msk [vmem:[#allocation2 + $0x38] sm:$0xff] %vm15, 0.0
  %v23 = vld [vmem:[%s0] sm:$0xff]
  %v24 = vld [vmem:[%s0 + $0x8] sm:$0x7f]
  %vm27 = vcmask 1040384
  %v28 = vrot.slane %v23, 7
  %v29 = vrot.slane %v24, 7
  %v30 = vsel %vm27, %v28, %v29
  %31 = vrot.lane.b32.xlu0 %v28, 4
  %v32 = vpop.permute.xlu0 %31
  %33 = vrot.lane.b32.xlu0 %v30, 4
  %v34 = vpop.permute.xlu0 %33
  %vm37 = vcmask 556065
  %38 = vst.msk [vmem:[#allocation2] sm:$0xfe] %vm37, %v32
  %vm39 = vcmask 556064
  %40 = vst.msk [vmem:[#allocation2 + $0x10] sm:$0xff] %vm39, %v34
  %v41 = vld [vmem:[%s0] sm:$0xff]
  %v42 = vld [vmem:[%s0 + $0x8] sm:$0xff]
  %45 = vrot.lane.b32.xlu0 %v41, 76
  %v46 = vpop.permute.xlu0 %45
  %47 = vrot.lane.b32.xlu0 %v42, 76
  %v48 = vpop.permute.xlu0 %47
  %vm51 = vcmask 1048160
  %52 = vst.msk [vmem:[#allocation2] sm:$0xff] %vm51, %v46
  %vm53 = vcmask 97280
  %54 = vst.msk [vmem:[#allocation2 + $0x8] sm:$0xff] %vm53, %v46
  %55 = vst.msk [vmem:[#allocation2 + $0x10] sm:$0xff] %vm51, %v48
  %56 = vst.msk [vmem:[#allocation2 + $0x18] sm:$0xff] %vm53, %v48
  %v57 = vld [vmem:[%s0 + $0x1] sm:$0xff]
  %v58 = vld [vmem:[%s0 + $0x9] sm:$0x7f]
  %61 = vrot.lane.b32.xlu0 %v57, 20
  %v62 = vpop.permute.xlu0 %61
  %63 = vrot.lane.b32.xlu0 %v58, 20
  %v64 = vpop.permute.xlu0 %63
  %vm67 = vcmask 687264
  %68 = vst.msk [vmem:[#allocation2 + $0x8] sm:$0xff] %vm67, %v62
  %vm69 = vcmask 686240
  %70 = vst.msk [vmem:[#allocation2 + $0x18] sm:$0x7f] %vm69, %v64
  %v71 = vld [vmem:[%s0 + $0x10] sm:$0xff]
  %v72 = vld [vmem:[%s0 + $0x18] sm:$0x7f]
  %v75 = vrot.slane %v71, 7
  %v76 = vrot.slane %v72, 7
  %v77 = vsel %vm27, %v75, %v76
  %78 = vrot.lane.b32.xlu0 %v75, 4
  %v79 = vpop.permute.xlu0 %78
  %80 = vrot.lane.b32.xlu0 %v77, 4
  %v81 = vpop.permute.xlu0 %80
  %84 = vst.msk [vmem:[#allocation2 + $0x20] sm:$0xfe] %vm37, %v79
  %85 = vst.msk [vmem:[#allocation2 + $0x30] sm:$0xff] %vm39, %v81
  %v86 = vld [vmem:[%s0 + $0x10] sm:$0xff]
  %v87 = vld [vmem:[%s0 + $0x18] sm:$0xff]
  %90 = vrot.lane.b32.xlu0 %v86, 76
  %v91 = vpop.permute.xlu0 %90
  %92 = vrot.lane.b32.xlu0 %v87, 76
  %v93 = vpop.permute.xlu0 %92
  %96 = vst.msk [vmem:[#allocation2 + $0x20] sm:$0xff] %vm51, %v91
  %97 = vst.msk [vmem:[#allocation2 + $0x28] sm:$0xff] %vm53, %v91
  %98 = vst.msk [vmem:[#allocation2 + $0x30] sm:$0xff] %vm51, %v93
  %99 = vst.msk [vmem:[#allocation2 + $0x38] sm:$0xff] %vm53, %v93
  %v100 = vld [vmem:[%s0 + $0x11] sm:$0xff]
  %v101 = vld [vmem:[%s0 + $0x19] sm:$0x7f]
  %104 = vrot.lane.b32.xlu0 %v100, 20
  %v105 = vpop.permute.xlu0 %104
  %106 = vrot.lane.b32.xlu0 %v101, 20
  %v107 = vpop.permute.xlu0 %106
  %110 = vst.msk [vmem:[#allocation2 + $0x28] sm:$0xff] %vm67, %v105
  %111 = vst.msk [vmem:[#allocation2 + $0x38] sm:$0x7f] %vm69, %v107
  %v112 = vld [vmem:[#allocation2] sm:$0xff]
  %v113 = vld [vmem:[#allocation2 + $0x8] sm:$0xff]
  %v114 = vld [vmem:[#allocation2 + $0x10] sm:$0xff]
  %v115 = vld [vmem:[#allocation2 + $0x18] sm:$0xff]
  %v116 = vld [vmem:[#allocation2 + $0x20] sm:$0xff]
  %v117 = vld [vmem:[#allocation2 + $0x28] sm:$0xff]
  %v118 = vld [vmem:[#allocation2 + $0x30] sm:$0xff]
  %v119 = vld [vmem:[#allocation2 + $0x38] sm:$0xff]
  %v120 = vld [vmem:[%s1] sm:$0xff]
  %v121 = vld [vmem:[%s1 + $0x8] sm:$0xff]
  %v122 = vld [vmem:[%s1 + $0x10] sm:$0xff]
  %v123 = vld [vmem:[%s1 + $0x18] sm:$0xff]
  %v124 = vld [vmem:[%s1 + $0x20] sm:$0xff]
  %v125 = vld [vmem:[%s1 + $0x28] sm:$0xff]
  %v126 = vld [vmem:[%s1 + $0x30] sm:$0xff]
  %v127 = vld [vmem:[%s1 + $0x38] sm:$0xff]
  %v128 = vld [vmem:[%s1 + $0x40] sm:$0xff]
  %v129 = vld [vmem:[%s1 + $0x48] sm:$0xff]
  %v130 = vld [vmem:[%s1 + $0x50] sm:$0xff]
  %v131 = vld [vmem:[%s1 + $0x58] sm:$0xff]
  %v132 = vld [vmem:[%s1 + $0x60] sm:$0xff]
  %v133 = vld [vmem:[%s1 + $0x68] sm:$0xff]
  %v134 = vld [vmem:[%s1 + $0x70] sm:$0xff]
  %v135 = vld [vmem:[%s1 + $0x78] sm:$0xff]
  %v136 = vld [vmem:[%s1 + $0x80] sm:$0xff]
  %v137 = vld [vmem:[%s1 + $0x88] sm:$0xff]
  %v138 = vld [vmem:[%s1 + $0x90] sm:$0xff]
  %v139 = vld [vmem:[%s1 + $0x98] sm:$0xff]
  %v140 = vld [vmem:[%s1 + $0xa0] sm:$0xff]
  %v141 = vld [vmem:[%s1 + $0xa8] sm:$0xff]
  %v142 = vld [vmem:[%s1 + $0xb0] sm:$0xff]
  %v143 = vld [vmem:[%s1 + $0xb8] sm:$0xff]
  %v144 = vld [vmem:[%s1 + $0xc0] sm:$0xff]
  %v145 = vld [vmem:[%s1 + $0xc8] sm:$0xff]
  %v146 = vld [vmem:[%s1 + $0xd0] sm:$0xff]
  %v147 = vld [vmem:[%s2] sm:$0x1]
  %v149 = vlaneseq
  %v150 = vshrl.u32 %v149, 7
  %v151 = vsub.s32 0, %v150
  %v152 = vrot.slane %v147, %v151
  %v155 = vsel %vm15, %v113, 0
  %v158 = vsel %vm15, %v115, 0
  %v161 = vsel %vm15, %v117, 0
  %v164 = vsel %vm15, %v119, 0
  %166 = vmatprep.subr.mxu0 0.0
  %167 = vmatpush1.msra.mxu0 %v120
  %168 = vmatprep.subr.mxu0 0.0
  %169 = vmatpush1.msra.mxu0 %v121
  %170 = vmatprep.subr.mxu0 0.0
  %171 = vmatpush1.msra.mxu0 %v122
  %172 = vmatprep.subr.mxu0 0.0
  %173 = vmatpush1.msra.mxu0 %v123
  %174 = vmatprep.subr.mxu0 0.0
  %175 = vmatpush1.msra.mxu0 %v124
  %176 = vmatprep.subr.mxu0 0.0
  %177 = vmatpush1.msra.mxu0 %v125
  %178 = vmatprep.subr.mxu0 0.0
  %179 = vmatpush1.msra.mxu0 %v126
  %180 = vmatprep.subr.mxu0 0.0
  %181 = vmatpush1.msra.mxu0 %v127
  %182 = vmatprep.subr.mxu0 0.0
  %183 = vmatpush1.msra.mxu0 %v128
  %184 = vmatprep.subr.mxu0 0.0
  %185 = vmatpush1.msra.mxu0 %v129
  %186 = vmatprep.subr.mxu0 0.0
  %187 = vmatpush1.msra.mxu0 %v130
  %188 = vmatprep.subr.mxu0 0.0
  %189 = vmatpush1.msra.mxu0 %v131
  %190 = vmatprep.subr.mxu0 0.0
  %191 = vmatpush1.msra.mxu0 %v132
  %192 = vmatprep.subr.mxu0 0.0
  %193 = vmatpush1.msra.mxu0 %v133
  %194 = vmatprep.subr.mxu0 0.0
  %195 = vmatpush1.msra.mxu0 %v134
  %196 = vmatprep.subr.mxu0 0.0
  %197 = vmatpush1.msra.mxu0 %v135
  %198 = vmatprep.subr.mxu0 0.0
  %199 = vmatpush1.msra.mxu0 %v136
  %200 = vmatprep.subr.mxu0 0.0
  %201 = vmatpush1.msra.mxu0 %v137
  %202 = vmatprep.subr.mxu0 0.0
  %203 = vmatpush1.msra.mxu0 %v138
  %204 = vmatprep.subr.mxu0 0.0
  %205 = vmatpush1.msra.mxu0 %v139
  %206 = vmatprep.subr.mxu0 0.0
  %207 = vmatpush1.msra.mxu0 %v140
  %208 = vmatprep.subr.mxu0 0.0
  %209 = vmatpush1.msra.mxu0 %v141
  %210 = vmatprep.subr.mxu0 0.0
  %211 = vmatpush1.msra.mxu0 %v142
  %212 = vmatprep.subr.mxu0 0.0
  %213 = vmatpush1.msra.mxu0 %v143
  %214 = vmatprep.subr.mxu0 0.0
  %215 = vmatpush1.msra.mxu0 %v144
  %216 = vmatprep.subr.mxu0 0.0
  %217 = vmatpush1.msra.mxu0 %v145
  %218 = vmatprep.subr.mxu0 0.0
  %219 = vmatpush1.msra.mxu0 %v146
  %220 = vmatprep.subr.mxu0 0.0
  %221 = vmatpush1.msra.mxu0 0.0
  %222 = vmatprep.subr.mxu0 0.0
  %223 = vmatpush1.msra.mxu0 0.0
  %224 = vmatprep.subr.mxu0 0.0
  %225 = vmatpush1.msra.mxu0 0.0
  %226 = vmatprep.subr.mxu0 0.0
  %227 = vmatpush1.msra.mxu0 0.0
  %228 = vmatprep.subr.mxu0 0.0
  %229 = vmatpush1.msra.mxu0 0.0
  %230 = vmatprep.mubr.f32.mxu0 %v155
  %231 = vmatmul.mubr.f32.gmra.mrb[0].mxu0 %v112
  %v232 = vpop.f32.mrb[0].mxu0
  %v233 = vadd.f32 %v152, %v232
  %v234 = vpop.f32.mrb[0].mxu0
  %235 = vmatprep.mubr.f32.mxu0 %v158
  %236 = vmatmul.mubr.f32.gmra.mrb[0].mxu0 %v114
  %v237 = vpop.f32.mrb[0].mxu0
  %v238 = vadd.f32 %v152, %v237
  %v239 = vpop.f32.mrb[0].mxu0
  %240 = vmatprep.mubr.f32.mxu0 %v161
  %241 = vmatmul.mubr.f32.gmra.mrb[0].mxu0 %v116
  %v242 = vpop.f32.mrb[0].mxu0
  %v243 = vadd.f32 %v152, %v242
  %v244 = vpop.f32.mrb[0].mxu0
  %245 = vmatprep.mubr.f32.mxu0 %v164
  %246 = vmatmul.mubr.f32.gmra.mrb[0].mxu0 %v118
  %v247 = vpop.f32.mrb[0].mxu0
  %v248 = vadd.f32 %v152, %v247
  %v249 = vpop.f32.mrb[0].mxu0
  %250 = vdwg.mxu0
  %251 = vst [vmem:[%s3] sm:$0xff] %v233
  %252 = vst [vmem:[%s3 + $0x8] sm:$0xff] %v238
  %253 = vst [vmem:[%s3 + $0x10] sm:$0xff] %v243
  %254 = vst [vmem:[%s3 + $0x18] sm:$0xff] %v248
  // Predicated region
  $region14: #{conv2d_op_forward.1} parent=0 // pred_check
    _
  $region15: #{conv2d_op_forward.1} parent=0 // pred_check_branch
    %256 = sbr.rel (0) target = $region17
  $region16: #{conv2d_op_forward.1} parent=0 // pred_region
    _
  $region17: #{conv2d_op_forward.1} parent=0 // pred_fallthru
    _
  // Predicated region
  $region18: #{conv2d_op_forward.1} parent=0 // pred_check
    _
  $region19: #{conv2d_op_forward.1} parent=0 // pred_check_branch
    %258 = sbr.rel (0) target = $region21
  $region20: #{conv2d_op_forward.1} parent=0 // pred_region
    _
  $region21: #{conv2d_op_forward.1} parent=0 // pred_fallthru
    _

</llo_original>
